<compile_context>
chip_gen: v7x
topology: tpu7x:2x2x1
jax: 0.10.0
libtpu: 0.0.40
codegen_flags: <defaults>
</compile_context>

<pallas_src>
import jax
import jax.numpy as jnp
from jax import lax
from jax.experimental import pallas as pl
from jax.experimental.pallas import tpu as pltpu


def _round_up(x, m):
    return ((x + m - 1) // m) * m


def _softplus(r):
    # Numerically stable softplus == log1p(exp(r)) without overflow for large r.
    return jnp.maximum(r, 0.0) + jnp.log1p(jnp.exp(-jnp.abs(r)))


def _bayesian_linear_kernel(x_ref, wmu_ref, wrho_ref, weps_ref,
                            bmu_ref, brho_ref, beps_ref, out_ref, acc_ref):
    k = pl.program_id(1)

    @pl.when(k == 0)
    def _():
        acc_ref[...] = jnp.zeros_like(acc_ref)

    # Reparameterized weight tile: W = mu + softplus(rho) * eps   (tn, tk)
    w = wmu_ref[...] + _softplus(wrho_ref[...]) * weps_ref[...]

    # acc += x_tile @ w_tile.T, expressed as dot_general with contracting dims
    # (1, 1) so the MXU is fed directly (no materialized transpose).
    acc_ref[...] += lax.dot_general(
        x_ref[...], w,
        dimension_numbers=(((1,), (1,)), ((), ())),
        preferred_element_type=jnp.float32)

    @pl.when(k == pl.num_programs(1) - 1)
    def _():
        # Reparameterized bias tile: b = mu + softplus(rho) * eps   (1, tn)
        b = bmu_ref[...] + _softplus(brho_ref[...]) * beps_ref[...]
        out_ref[...] = (acc_ref[...] + b).astype(out_ref.dtype)


def bayesian_linear_forward(x, weight_mu, weight_rho, weight_eps,
                            bias_mu, bias_rho, bias_eps, *, tn=256, tk=512):
    """x: (B, in), weight_*: (out, in), bias_*: (out,) -> (B, out) float32."""
    B, in_f = x.shape
    out_f = weight_mu.shape[0]

    # Tile sizes: multiples of 128, clamped so tiny layers don't over-pad.
    tn = min(tn, _round_up(out_f, 128))
    tk = min(tk, _round_up(in_f, 128))
    out_pad = _round_up(out_f, tn)
    in_pad = _round_up(in_f, tk)
    b_pad = _round_up(B, 8)

    def pad2(a, rows, cols):
        return jnp.pad(a, ((0, rows - a.shape[0]), (0, cols - a.shape[1])))

    x_p = pad2(x.astype(jnp.float32), b_pad, in_pad)
    wmu_p = pad2(weight_mu, out_pad, in_pad)
    wrho_p = pad2(weight_rho, out_pad, in_pad)
    weps_p = pad2(weight_eps, out_pad, in_pad)
    bmu_p = jnp.pad(bias_mu, (0, out_pad - out_f)).reshape(1, out_pad)
    brho_p = jnp.pad(bias_rho, (0, out_pad - out_f)).reshape(1, out_pad)
    beps_p = jnp.pad(bias_eps, (0, out_pad - out_f)).reshape(1, out_pad)

    grid = (out_pad // tn, in_pad // tk)

    w_spec = pl.BlockSpec((tn, tk), lambda j, k: (j, k))
    b_spec = pl.BlockSpec((1, tn), lambda j, k: (0, j))

    cost = pl.CostEstimate(
        flops=int(2 * b_pad * in_pad * out_pad + 4 * out_pad * in_pad),
        transcendentals=int(2 * out_pad * in_pad + 2 * out_pad),
        bytes_accessed=int(4 * (b_pad * in_pad + 3 * out_pad * in_pad
                                + 3 * out_pad + b_pad * out_pad)),
    )

    out_padded = pl.pallas_call(
        _bayesian_linear_kernel,
        out_shape=jax.ShapeDtypeStruct((b_pad, out_pad), jnp.float32),
        grid_spec=pltpu.PrefetchScalarGridSpec(
            num_scalar_prefetch=0,
            grid=grid,
            in_specs=[
                pl.BlockSpec((b_pad, tk), lambda j, k: (0, k)),   # x
                w_spec, w_spec, w_spec,                           # weight mu/rho/eps
                b_spec, b_spec, b_spec,                           # bias mu/rho/eps
            ],
            out_specs=pl.BlockSpec((b_pad, tn), lambda j, k: (0, j)),
            scratch_shapes=[pltpu.VMEM((b_pad, tn), jnp.float32)],
        ),
        compiler_params=pltpu.CompilerParams(
            dimension_semantics=("parallel", "arbitrary"),
            vmem_limit_bytes=32 * 1024 * 1024,
        ),
        cost_estimate=cost,
    )(x_p, wmu_p, wrho_p, weps_p, bmu_p, brho_p, beps_p)

    return out_padded[:B, :out_f]


if __name__ == "__main__":
    # Small shapes consistent with the module: batch=8, in_features=32, out_features=64.
    batch, in_features, out_features = 8, 32, 64
    prior_mu = 0.0

    key = jax.random.PRNGKey(0)
    k_x, k_wmu, k_wrho, k_bmu, k_brho, k_weps, k_beps = jax.random.split(key, 7)

    # Deterministic parameter init matching BayesianLinear.__init__:
    #   weight_mu ~ N(prior_mu, 0.2), weight_rho ~ U(-3, -2), same for bias.
    x = jax.random.normal(k_x, (batch, in_features), dtype=jnp.float32)
    weight_mu = prior_mu + 0.2 * jax.random.normal(
        k_wmu, (out_features, in_features), dtype=jnp.float32)
    weight_rho = jax.random.uniform(
        k_wrho, (out_features, in_features), dtype=jnp.float32, minval=-3.0, maxval=-2.0)
    bias_mu = prior_mu + 0.2 * jax.random.normal(
        k_bmu, (out_features,), dtype=jnp.float32)
    bias_rho = jax.random.uniform(
        k_brho, (out_features,), dtype=jnp.float32, minval=-3.0, maxval=-2.0)

    # Reparameterization noise (randn_like in torch) — sampled once per forward.
    weight_eps = jax.random.normal(k_weps, (out_features, in_features), dtype=jnp.float32)
    bias_eps = jax.random.normal(k_beps, (out_features,), dtype=jnp.float32)

    out = bayesian_linear_forward(x, weight_mu, weight_rho, weight_eps,
                                  bias_mu, bias_rho, bias_eps)
    jax.block_until_ready(out)

    # Reference check in plain JAX (same math, off the kernel path).
    w = weight_mu + jnp.log1p(jnp.exp(weight_rho)) * weight_eps
    b = bias_mu + jnp.log1p(jnp.exp(bias_rho)) * bias_eps
    ref = x @ w.T + b
    assert out.shape == (batch, out_features)
    assert jnp.allclose(out, ref, atol=1e-5, rtol=1e-5)

    print("KERNEL_OK")
</pallas_src>

<mosaic_0001>
module attributes {stable_mosaic.version = 11 : i64} {
  func.func @_bayesian_linear_kernel(%arg0: i32, %arg1: i32, %arg2: memref<8x128xf32, #tpu.memory_space<vmem>>, %arg3: memref<128x128xf32, #tpu.memory_space<vmem>>, %arg4: memref<128x128xf32, #tpu.memory_space<vmem>>, %arg5: memref<128x128xf32, #tpu.memory_space<vmem>>, %arg6: memref<1x128xf32, #tpu.memory_space<vmem>>, %arg7: memref<1x128xf32, #tpu.memory_space<vmem>>, %arg8: memref<1x128xf32, #tpu.memory_space<vmem>>, %arg9: memref<8x128xf32, #tpu.memory_space<vmem>>, %arg10: memref<8x128xf32, #tpu.memory_space<vmem>>) attributes {dimension_semantics = [#tpu.dimension_semantics<parallel>, #tpu.dimension_semantics<arbitrary>], iteration_bounds = array<i64: 1, 1>, scalar_prefetch = 0 : i64, scratch_operands = 1 : i64, tpu.core_type = #tpu.core_type<tc>, window_params = [{transform_indices = @transform_0, window_bounds = array<i64: 8, 128>}, {transform_indices = @transform_1, window_bounds = array<i64: 128, 128>}, {transform_indices = @transform_2, window_bounds = array<i64: 128, 128>}, {transform_indices = @transform_3, window_bounds = array<i64: 128, 128>}, {transform_indices = @transform_4, window_bounds = array<i64: 1, 128>}, {transform_indices = @transform_5, window_bounds = array<i64: 1, 128>}, {transform_indices = @transform_6, window_bounds = array<i64: 1, 128>}, {transform_indices = @transform_7, window_bounds = array<i64: 8, 128>}]} {
    %c0_i32 = arith.constant 0 : i32
    %0 = arith.cmpi eq, %arg1, %c0_i32 : i32
    %1 = arith.extui %0 : i1 to i32
    %c0_i32_0 = arith.constant 0 : i32
    %2 = arith.cmpi ne, %1, %c0_i32_0 : i32
    scf.if %2 {
      %cst_16 = arith.constant 0.000000e+00 : f32
      %24 = vector.broadcast %cst_16 : f32 to vector<8x128xf32>
      %c0_17 = arith.constant 0 : index
      %c0_18 = arith.constant 0 : index
      %25 = vector.load %arg10[%c0_17, %c0_18] : memref<8x128xf32, #tpu.memory_space<vmem>>, vector<8x128xf32>
      tpu.vector_store %arg10[%c0_17, %c0_18], %24 {strides = array<i32>} : memref<8x128xf32, #tpu.memory_space<vmem>>, vector<8x128xf32>,
    } else {
    }
    %c0 = arith.constant 0 : index
    %c0_1 = arith.constant 0 : index
    %3 = vector.load %arg3[%c0, %c0_1] : memref<128x128xf32, #tpu.memory_space<vmem>>, vector<128x128xf32>
    %c0_2 = arith.constant 0 : index
    %c0_3 = arith.constant 0 : index
    %4 = vector.load %arg4[%c0_2, %c0_3] : memref<128x128xf32, #tpu.memory_space<vmem>>, vector<128x128xf32>
    %cst = arith.constant 0.000000e+00 : f32
    %5 = vector.broadcast %cst : f32 to vector<128x128xf32>
    %6 = arith.maximumf %4, %5 : vector<128x128xf32>
    %7 = math.absf %4 : vector<128x128xf32>
    %cst_4 = arith.constant 0.000000e+00 : f32
    %8 = vector.broadcast %cst_4 : f32 to vector<128x128xf32>
    %9 = arith.subf %8, %7 : vector<128x128xf32>
    %10 = math.exp %9 : vector<128x128xf32>
    %11 = math.log1p %10 : vector<128x128xf32>
    %12 = arith.addf %6, %11 : vector<128x128xf32>
    %c0_5 = arith.constant 0 : index
    %c0_6 = arith.constant 0 : index
    %13 = vector.load %arg5[%c0_5, %c0_6] : memref<128x128xf32, #tpu.memory_space<vmem>>, vector<128x128xf32>
    %14 = arith.mulf %12, %13 : vector<128x128xf32>
    %15 = arith.addf %3, %14 : vector<128x128xf32>
    %c0_7 = arith.constant 0 : index
    %c0_8 = arith.constant 0 : index
    %16 = vector.load %arg10[%c0_7, %c0_8] : memref<8x128xf32, #tpu.memory_space<vmem>>, vector<8x128xf32>
    %c0_9 = arith.constant 0 : index
    %c0_10 = arith.constant 0 : index
    %17 = vector.load %arg2[%c0_9, %c0_10] : memref<8x128xf32, #tpu.memory_space<vmem>>, vector<8x128xf32>
    %cst_11 = arith.constant dense<0.000000e+00> : vector<8x128xf32>
    %18 = tpu.matmul %17, %15, %cst_11 {dimension_numbers = #tpu.dot_dimension_numbers<[1], [1], [0], [0], [0, 0, 1, 0], [], []>} : vector<8x128xf32>, vector<128x128xf32>, vector<8x128xf32> -> vector<8x128xf32>
    %19 = arith.addf %16, %18 : vector<8x128xf32>
    %c0_12 = arith.constant 0 : index
    %c0_13 = arith.constant 0 : index
    %20 = vector.load %arg10[%c0_12, %c0_13] : memref<8x128xf32, #tpu.memory_space<vmem>>, vector<8x128xf32>
    tpu.vector_store %arg10[%c0_12, %c0_13], %19 {strides = array<i32>} : memref<8x128xf32, #tpu.memory_space<vmem>>, vector<8x128xf32>,
    %c0_i32_14 = arith.constant 0 : i32
    %21 = arith.cmpi eq, %arg1, %c0_i32_14 : i32
    %22 = arith.extui %21 : i1 to i32
    %c0_i32_15 = arith.constant 0 : i32
    %23 = arith.cmpi ne, %22, %c0_i32_15 : i32
    scf.if %23 {
      %c0_16 = arith.constant 0 : index
      %c0_17 = arith.constant 0 : index
      %24 = vector.load %arg6[%c0_16, %c0_17] : memref<1x128xf32, #tpu.memory_space<vmem>>, vector<1x128xf32>
      %c0_18 = arith.constant 0 : index
      %c0_19 = arith.constant 0 : index
      %25 = vector.load %arg7[%c0_18, %c0_19] : memref<1x128xf32, #tpu.memory_space<vmem>>, vector<1x128xf32>
      %cst_20 = arith.constant 0.000000e+00 : f32
      %26 = vector.broadcast %cst_20 : f32 to vector<1x128xf32>
      %27 = arith.maximumf %25, %26 : vector<1x128xf32>
      %28 = math.absf %25 : vector<1x128xf32>
      %cst_21 = arith.constant 0.000000e+00 : f32
      %29 = vector.broadcast %cst_21 : f32 to vector<1x128xf32>
      %30 = arith.subf %29, %28 : vector<1x128xf32>
      %31 = math.exp %30 : vector<1x128xf32>
      %32 = math.log1p %31 : vector<1x128xf32>
      %33 = arith.addf %27, %32 : vector<1x128xf32>
      %c0_22 = arith.constant 0 : index
      %c0_23 = arith.constant 0 : index
      %34 = vector.load %arg8[%c0_22, %c0_23] : memref<1x128xf32, #tpu.memory_space<vmem>>, vector<1x128xf32>
      %35 = arith.mulf %33, %34 : vector<1x128xf32>
      %36 = arith.addf %24, %35 : vector<1x128xf32>
      %c0_24 = arith.constant 0 : index
      %c0_25 = arith.constant 0 : index
      %37 = vector.load %arg10[%c0_24, %c0_25] : memref<8x128xf32, #tpu.memory_space<vmem>>, vector<8x128xf32>
      %38 = vector.broadcast %36 : vector<1x128xf32> to vector<8x128xf32>
      %39 = arith.addf %37, %38 : vector<8x128xf32>
      %c0_26 = arith.constant 0 : index
      %c0_27 = arith.constant 0 : index
      %40 = vector.load %arg9[%c0_26, %c0_27] : memref<8x128xf32, #tpu.memory_space<vmem>>, vector<8x128xf32>
      tpu.vector_store %arg9[%c0_26, %c0_27], %39 {strides = array<i32>} : memref<8x128xf32, #tpu.memory_space<vmem>>, vector<8x128xf32>,
    } else {
    }
    return
  }
  func.func @transform_0(%arg0: i32, %arg1: i32) -> (i32, i32) {
    %c0_i32 = arith.constant 0 : i32
    %c0_i32_0 = arith.constant 0 : i32
    return %c0_i32, %arg1 : i32, i32
  }
  func.func @transform_1(%arg0: i32, %arg1: i32) -> (i32, i32) {
    %c0_i32 = arith.constant 0 : i32
    return %arg0, %arg1 : i32, i32
  }
  func.func @transform_2(%arg0: i32, %arg1: i32) -> (i32, i32) {
    %c0_i32 = arith.constant 0 : i32
    return %arg0, %arg1 : i32, i32
  }
  func.func @transform_3(%arg0: i32, %arg1: i32) -> (i32, i32) {
    %c0_i32 = arith.constant 0 : i32
    return %arg0, %arg1 : i32, i32
  }
  func.func @transform_4(%arg0: i32, %arg1: i32) -> (i32, i32) {
    %c0_i32 = arith.constant 0 : i32
    %c0_i32_0 = arith.constant 0 : i32
    return %c0_i32, %arg0 : i32, i32
  }
  func.func @transform_5(%arg0: i32, %arg1: i32) -> (i32, i32) {
    %c0_i32 = arith.constant 0 : i32
    %c0_i32_0 = arith.constant 0 : i32
    return %c0_i32, %arg0 : i32, i32
  }
  func.func @transform_6(%arg0: i32, %arg1: i32) -> (i32, i32) {
    %c0_i32 = arith.constant 0 : i32
    %c0_i32_0 = arith.constant 0 : i32
    return %c0_i32, %arg0 : i32, i32
  }
  func.func @transform_7(%arg0: i32, %arg1: i32) -> (i32, i32) {
    %c0_i32 = arith.constant 0 : i32
    %c0_i32_0 = arith.constant 0 : i32
    return %c0_i32, %arg0 : i32, i32
  }
}

</mosaic_0001>

<llo_original>
// kernel: tpu_custom_call.1
$region0: #{tpu_custom_call.1}
  #allocation0 [shape = 'u32[]', space=smem, size = 0x4, offset = 0x4, fixed_abs, tag = 'smem constant byte address 0x4 - core index']
  #allocation1 [shape = 'u32[144,128]{1,0:T(1,128)}', space=vmem, size = 0x12000, scoped, tag = 'internal scratch']
  #allocation2 [shape = 'f32[8,128]{1,0:T(8,128)}', space=vmem, size = 0x1000, scoped, tag = 'scratch operand']
  %s0 = inlined_call_operand.hbm [shape: f32[8,128], index: 0, kind: input, shape index: {}]
  %s1 = inlined_call_operand.hbm [shape: f32[128,128], index: 1, kind: input, shape index: {}]
  %s2 = inlined_call_operand.hbm [shape: f32[128,128], index: 2, kind: input, shape index: {}]
  %s3 = inlined_call_operand.hbm [shape: f32[128,128], index: 3, kind: input, shape index: {}]
  %s4 = inlined_call_operand.vmem [shape: f32[1,128], index: 4, kind: input, shape index: {}]
  %s5 = inlined_call_operand.vmem [shape: f32[1,128], index: 5, kind: input, shape index: {}]
  %s6 = inlined_call_operand.vmem [shape: f32[1,128], index: 6, kind: input, shape index: {}]
  %s7 = inlined_call_operand.hbm [shape: f32[8,128], index: 7, kind: output, shape index: {}]
  %s8 = sld [smem:[#allocation0]]
  $region62: #{tpu_custom_call.1} parent=0
    _
  %s10 = ssub.s32 1, %s8
  %s11 = scalar_select 0, %s10, %s8
  $region1: #{tpu_custom_call.1} parent=0
    #allocation3 [shape = 'u8[4096]{0}', space=vmem, size = 0x1000, scoped, tag = 'input window, operand 0, single buffered']
    #allocation4 [shape = 's32[1]{0}', space=sflag, size = 0x4, scoped, tag = 'scoped memory for tpu_custom_call.1']
    #allocation5 [shape = 's32[1]{0}', space=sflag, size = 0x4, scoped, tag = 'scoped memory for tpu_custom_call.1']
    #allocation6 [shape = 'u8[65536]{0}', space=vmem, size = 0x10000, scoped, tag = 'input window, operand 1, single buffered']
    #allocation7 [shape = 's32[1]{0}', space=sflag, size = 0x4, scoped, tag = 'scoped memory for tpu_custom_call.1']
    #allocation8 [shape = 'u8[65536]{0}', space=vmem, size = 0x10000, scoped, tag = 'input window, operand 2, single buffered']
    #allocation9 [shape = 'u8[65536]{0}', space=vmem, size = 0x10000, scoped, tag = 'input window, operand 3, single buffered']
    #allocation10 [shape = 's32[1]{0}', space=sflag, size = 0x4, scoped, tag = 'scoped memory for tpu_custom_call.1']
    #allocation11 [shape = 'u8[4096]{0}', space=vmem, size = 0x1000, scoped, tag = 'output window, operand 0, single buffered']
    %12 = vsyncpa [#allocation4], 0
    %13 = vsyncpa [#allocation7], 0
    %14 = vsyncpa [#allocation10], 0
    %15 = vsyncpa [#allocation5], 0
    // Predicated region
    $region2: #{tpu_custom_call.1} parent=1 // pred_check
      _
    $region3: #{tpu_custom_call.1} parent=1 // pred_check_branch
      %17 = sbr.rel (0) target = $region5
    $region4: #{tpu_custom_call.1} parent=1 // pred_region
      %s19 = ssub.s32 128, 128
      %20 = vsyncadd [#allocation4], %s19
      %s22 = sshll.u32 [#allocation3], 4
      %s23 = int_to_ptr.vmem [resolvable:$true] %s22
      %25 = dma.hbm_to_vmem [thread:$0]  %s0, 128, %s23, [#allocation4]
    $region5: #{tpu_custom_call.1} parent=1 // pred_fallthru
      _
    // Predicated region
    $region6: #{tpu_custom_call.1} parent=1 // pred_check
      _
    $region7: #{tpu_custom_call.1} parent=1 // pred_check_branch
      %27 = sbr.rel (0) target = $region9
    $region8: #{tpu_custom_call.1} parent=1 // pred_region
      %s29 = ssub.s32 2048, 2048
      %30 = vsyncadd [#allocation7], %s29
      %s31 = sshll.u32 [#allocation6], 4
      %s32 = int_to_ptr.vmem [resolvable:$true] %s31
      %37 = dma.hbm_to_vmem [thread:$0]  %s1, 2048, %s32, [#allocation7], 128, 128, 8
    $region9: #{tpu_custom_call.1} parent=1 // pred_fallthru
      _
    // Predicated region
    $region10: #{tpu_custom_call.1} parent=1 // pred_check
      _
    $region11: #{tpu_custom_call.1} parent=1 // pred_check_branch
      %39 = sbr.rel (0) target = $region13
    $region12: #{tpu_custom_call.1} parent=1 // pred_region
      %s41 = ssub.s32 2048, 2048
      %42 = vsyncadd [#allocation7], %s41
      %s43 = sshll.u32 [#allocation8], 4
      %s44 = int_to_ptr.vmem [resolvable:$true] %s43
      %49 = dma.hbm_to_vmem [thread:$0]  %s2, 2048, %s44, [#allocation7], 128, 128, 8
    $region13: #{tpu_custom_call.1} parent=1 // pred_fallthru
      _
    // Predicated region
    $region14: #{tpu_custom_call.1} parent=1 // pred_check
      _
    $region15: #{tpu_custom_call.1} parent=1 // pred_check_branch
      %51 = sbr.rel (0) target = $region17
    $region16: #{tpu_custom_call.1} parent=1 // pred_region
      %s53 = ssub.s32 2048, 2048
      %54 = vsyncadd [#allocation10], %s53
      %s55 = sshll.u32 [#allocation9], 4
      %s56 = int_to_ptr.vmem [resolvable:$true] %s55
      %61 = dma.hbm_to_vmem [thread:$0]  %s3, 2048, %s56, [#allocation10], 128, 128, 8
    $region17: #{tpu_custom_call.1} parent=1 // pred_fallthru
      _
    // Predicated region
    $region18: #{tpu_custom_call.1} parent=1 // pred_check
      _
    $region19: #{tpu_custom_call.1} parent=1 // pred_check_branch
      %63 = sbr.rel (0) target = $region21
    $region20: #{tpu_custom_call.1} parent=1 // pred_region
      _
    $region21: #{tpu_custom_call.1} parent=1 // pred_fallthru
      _
    // Predicated region
    $region22: #{tpu_custom_call.1} parent=1 // pred_check
      _
    $region23: #{tpu_custom_call.1} parent=1 // pred_check_branch
      %65 = sbr.rel (0) target = $region25
    $region24: #{tpu_custom_call.1} parent=1 // pred_region
      _
    $region25: #{tpu_custom_call.1} parent=1 // pred_fallthru
      _
    // Predicated region
    $region26: #{tpu_custom_call.1} parent=1 // pred_check
      _
    $region27: #{tpu_custom_call.1} parent=1 // pred_check_branch
      %67 = sbr.rel (0) target = $region29
    $region28: #{tpu_custom_call.1} parent=1 // pred_region
      _
    $region29: #{tpu_custom_call.1} parent=1 // pred_fallthru
      _
    // Predicated region
    $region30: #{tpu_custom_call.1} parent=1 // pred_check
      _
    $region31: #{tpu_custom_call.1} parent=1 // pred_check_branch
      %69 = sbr.rel (0) target = $region33
    $region32: #{tpu_custom_call.1} parent=1 // pred_region
      %70 = dma.done [#allocation4], 128
    $region33: #{tpu_custom_call.1} parent=1 // pred_fallthru
      _
    // Predicated region
    $region34: #{tpu_custom_call.1} parent=1 // pred_check
      _
    $region35: #{tpu_custom_call.1} parent=1 // pred_check_branch
      %72 = sbr.rel (0) target = $region37
    $region36: #{tpu_custom_call.1} parent=1 // pred_region
      %73 = dma.done [#allocation7], 2048
    $region37: #{tpu_custom_call.1} parent=1 // pred_fallthru
      _
    // Predicated region
    $region38: #{tpu_custom_call.1} parent=1 // pred_check
      _
    $region39: #{tpu_custom_call.1} parent=1 // pred_check_branch
      %75 = sbr.rel (0) target = $region41
    $region40: #{tpu_custom_call.1} parent=1 // pred_region
      %76 = dma.done [#allocation7], 2048
    $region41: #{tpu_custom_call.1} parent=1 // pred_fallthru
      _
    // Predicated region
    $region42: #{tpu_custom_call.1} parent=1 // pred_check
      _
    $region43: #{tpu_custom_call.1} parent=1 // pred_check_branch
      %78 = sbr.rel (0) target = $region45
    $region44: #{tpu_custom_call.1} parent=1 // pred_region
      %79 = dma.done [#allocation10], 2048
    $region45: #{tpu_custom_call.1} parent=1 // pred_fallthru
      _
    %p80 = scmp.eq.s32.totalorder 0, 0
    // Predicated region
    $region46: #{tpu_custom_call.1} parent=1 // pred_check
      %p81 = pneg %p80
    $region47: #{tpu_custom_call.1} parent=1 // pred_check_branch
      %83 = sbr.rel (%p81) target = $region49
    $region48: #{tpu_custom_call.1} parent=1 // pred_region
      %84 = vst [vmem:[#allocation2] sm:$0xff] 0.0
    $region49: #{tpu_custom_call.1} parent=1 // pred_fallthru
      _
    %v85 = vld [vmem:[#allocation6] sm:$0xff]
    %v86 = vld [vmem:[#allocation6 + $0x8] sm:$0xff]
    %v87 = vld [vmem:[#allocation6 + $0x10] sm:$0xff]
    %v88 = vld [vmem:[#allocation6 + $0x18] sm:$0xff]
    %v89 = vld [vmem:[#allocation6 + $0x20] sm:$0xff]
    %v90 = vld [vmem:[#allocation6 + $0x28] sm:$0xff]
    %v91 = vld [vmem:[#allocation6 + $0x30] sm:$0xff]
    %v92 = vld [vmem:[#allocation6 + $0x38] sm:$0xff]
    %v93 = vld [vmem:[#allocation6 + $0x40] sm:$0xff]
    %v94 = vld [vmem:[#allocation6 + $0x48] sm:$0xff]
    %v95 = vld [vmem:[#allocation6 + $0x50] sm:$0xff]
    %v96 = vld [vmem:[#allocation6 + $0x58] sm:$0xff]
    %v97 = vld [vmem:[#allocation6 + $0x60] sm:$0xff]
    %v98 = vld [vmem:[#allocation6 + $0x68] sm:$0xff]
    %v99 = vld [vmem:[#allocation6 + $0x70] sm:$0xff]
    %v100 = vld [vmem:[#allocation6 + $0x78] sm:$0xff]
    %v101 = vld [vmem:[#allocation8] sm:$0xff]
    %v102 = vld [vmem:[#allocation8 + $0x8] sm:$0xff]
    %v103 = vld [vmem:[#allocation8 + $0x10] sm:$0xff]
    %v104 = vld [vmem:[#allocation8 + $0x18] sm:$0xff]
    %v105 = vld [vmem:[#allocation8 + $0x20] sm:$0xff]
    %v106 = vld [vmem:[#allocation8 + $0x28] sm:$0xff]
    %v107 = vld [vmem:[#allocation8 + $0x30] sm:$0xff]
    %v108 = vld [vmem:[#allocation8 + $0x38] sm:$0xff]
    %v109 = vld [vmem:[#allocation8 + $0x40] sm:$0xff]
    %v110 = vld [vmem:[#allocation8 + $0x48] sm:$0xff]
    %v111 = vld [vmem:[#allocation8 + $0x50] sm:$0xff]
    %v112 = vld [vmem:[#allocation8 + $0x58] sm:$0xff]
    %v113 = vld [vmem:[#allocation8 + $0x60] sm:$0xff]
    %v114 = vld [vmem:[#allocation8 + $0x68] sm:$0xff]
    %v115 = vld [vmem:[#allocation8 + $0x70] sm:$0xff]
    %v116 = vld [vmem:[#allocation8 + $0x78] sm:$0xff]
    %v117 = vmax.f32 %v101, 0.0
    %v118 = vmax.f32 %v102, 0.0
    %v119 = vmax.f32 %v103, 0.0
    %v120 = vmax.f32 %v104, 0.0
    %v121 = vmax.f32 %v105, 0.0
    %v122 = vmax.f32 %v106, 0.0
    %v123 = vmax.f32 %v107, 0.0
    %v124 = vmax.f32 %v108, 0.0
    %v125 = vmax.f32 %v109, 0.0
    %v126 = vmax.f32 %v110, 0.0
    %v127 = vmax.f32 %v111, 0.0
    %v128 = vmax.f32 %v112, 0.0
    %v129 = vmax.f32 %v113, 0.0
    %v130 = vmax.f32 %v114, 0.0
    %v131 = vmax.f32 %v115, 0.0
    %v132 = vmax.f32 %v116, 0.0
    %v133 = vand.u32 2147483647, %v101
    %v134 = vand.u32 2147483647, %v102
    %v135 = vand.u32 2147483647, %v103
    %v136 = vand.u32 2147483647, %v104
    %v137 = vand.u32 2147483647, %v105
    %v138 = vand.u32 2147483647, %v106
    %v139 = vand.u32 2147483647, %v107
    %v140 = vand.u32 2147483647, %v108
    %v141 = vand.u32 2147483647, %v109
    %v142 = vand.u32 2147483647, %v110
    %v143 = vand.u32 2147483647, %v111
    %v144 = vand.u32 2147483647, %v112
    %v145 = vand.u32 2147483647, %v113
    %v146 = vand.u32 2147483647, %v114
    %v147 = vand.u32 2147483647, %v115
    %v148 = vand.u32 2147483647, %v116
    %v149 = vsub.f32 0.0, %v133
    %v150 = vsub.f32 0.0, %v134
    %v151 = vsub.f32 0.0, %v135
    %v152 = vsub.f32 0.0, %v136
    %v153 = vsub.f32 0.0, %v137
    %v154 = vsub.f32 0.0, %v138
    %v155 = vsub.f32 0.0, %v139
    %v156 = vsub.f32 0.0, %v140
    %v157 = vsub.f32 0.0, %v141
    %v158 = vsub.f32 0.0, %v142
    %v159 = vsub.f32 0.0, %v143
    %v160 = vsub.f32 0.0, %v144
    %v161 = vsub.f32 0.0, %v145
    %v162 = vsub.f32 0.0, %v146
    %v163 = vsub.f32 0.0, %v147
    %v164 = vsub.f32 0.0, %v148
    %v165 = vmul.f32 %v149, 1.442695
    %v166 = vpow.pop %v165
    %v167 = vmul.f32 %v150, 1.442695
    %v168 = vpow.pop %v167
    %v169 = vmul.f32 %v151, 1.442695
    %v170 = vpow.pop %v169
    %v171 = vmul.f32 %v152, 1.442695
    %v172 = vpow.pop %v171
    %v173 = vmul.f32 %v153, 1.442695
    %v174 = vpow.pop %v173
    %v175 = vmul.f32 %v154, 1.442695
    %v176 = vpow.pop %v175
    %v177 = vmul.f32 %v155, 1.442695
    %v178 = vpow.pop %v177
    %v179 = vmul.f32 %v156, 1.442695
    %v180 = vpow.pop %v179
    %v181 = vmul.f32 %v157, 1.442695
    %v182 = vpow.pop %v181
    %v183 = vmul.f32 %v158, 1.442695
    %v184 = vpow.pop %v183
    %v185 = vmul.f32 %v159, 1.442695
    %v186 = vpow.pop %v185
    %v187 = vmul.f32 %v160, 1.442695
    %v188 = vpow.pop %v187
    %v189 = vmul.f32 %v161, 1.442695
    %v190 = vpow.pop %v189
    %v191 = vmul.f32 %v162, 1.442695
    %v192 = vpow.pop %v191
    %v193 = vmul.f32 %v163, 1.442695
    %v194 = vpow.pop %v193
    %v195 = vmul.f32 %v164, 1.442695
    %v196 = vpow.pop %v195
    %v197 = vadd.f32 %v166, 1.0
    %v198 = vlog2.pop %v197
    %v199 = vmul.f32 %v198, 0.6931472
    %v200 = vmul.f32 -0.5, %v166
    %v201 = vadd.f32 %v200, 1.0
    %v202 = vmul.f32 %v201, %v166
    %v203 = vand.u32 2147483647, %v166
    %vm204 = vcmp.lt.f32.partialorder %v203, 0.0004427343
    %v205 = vsel %vm204, %v202, %v199
    %v206 = vadd.f32 %v168, 1.0
    %v207 = vlog2.pop %v206
    %v208 = vmul.f32 %v207, 0.6931472
    %v209 = vmul.f32 -0.5, %v168
    %v210 = vadd.f32 %v209, 1.0
    %v211 = vmul.f32 %v210, %v168
    %v212 = vand.u32 2147483647, %v168
    %vm213 = vcmp.lt.f32.partialorder %v212, 0.0004427343
    %v214 = vsel %vm213, %v211, %v208
    %v215 = vadd.f32 %v170, 1.0
    %v216 = vlog2.pop %v215
    %v217 = vmul.f32 %v216, 0.6931472
    %v218 = vmul.f32 -0.5, %v170
    %v219 = vadd.f32 %v218, 1.0
    %v220 = vmul.f32 %v219, %v170
    %v221 = vand.u32 2147483647, %v170
    %vm222 = vcmp.lt.f32.partialorder %v221, 0.0004427343
    %v223 = vsel %vm222, %v220, %v217
    %v224 = vadd.f32 %v172, 1.0
    %v225 = vlog2.pop %v224
    %v226 = vmul.f32 %v225, 0.6931472
    %v227 = vmul.f32 -0.5, %v172
    %v228 = vadd.f32 %v227, 1.0
    %v229 = vmul.f32 %v228, %v172
    %v230 = vand.u32 2147483647, %v172
    %vm231 = vcmp.lt.f32.partialorder %v230, 0.0004427343
    %v232 = vsel %vm231, %v229, %v226
    %v233 = vadd.f32 %v174, 1.0
    %v234 = vlog2.pop %v233
    %v235 = vmul.f32 %v234, 0.6931472
    %v236 = vmul.f32 -0.5, %v174
    %v237 = vadd.f32 %v236, 1.0
    %v238 = vmul.f32 %v237, %v174
    %v239 = vand.u32 2147483647, %v174
    %vm240 = vcmp.lt.f32.partialorder %v239, 0.0004427343
    %v241 = vsel %vm240, %v238, %v235
    %v242 = vadd.f32 %v176, 1.0
    %v243 = vlog2.pop %v242
    %v244 = vmul.f32 %v243, 0.6931472
    %v245 = vmul.f32 -0.5, %v176
    %v246 = vadd.f32 %v245, 1.0
    %v247 = vmul.f32 %v246, %v176
    %v248 = vand.u32 2147483647, %v176
    %vm249 = vcmp.lt.f32.partialorder %v248, 0.0004427343
    %v250 = vsel %vm249, %v247, %v244
    %v251 = vadd.f32 %v178, 1.0
    %v252 = vlog2.pop %v251
    %v253 = vmul.f32 %v252, 0.6931472
    %v254 = vmul.f32 -0.5, %v178
    %v255 = vadd.f32 %v254, 1.0
    %v256 = vmul.f32 %v255, %v178
    %v257 = vand.u32 2147483647, %v178
    %vm258 = vcmp.lt.f32.partialorder %v257, 0.0004427343
    %v259 = vsel %vm258, %v256, %v253
    %v260 = vadd.f32 %v180, 1.0
    %v261 = vlog2.pop %v260
    %v262 = vmul.f32 %v261, 0.6931472
    %v263 = vmul.f32 -0.5, %v180
    %v264 = vadd.f32 %v263, 1.0
    %v265 = vmul.f32 %v264, %v180
    %v266 = vand.u32 2147483647, %v180
    %vm267 = vcmp.lt.f32.partialorder %v266, 0.0004427343
    %v268 = vsel %vm267, %v265, %v262
    %v269 = vadd.f32 %v182, 1.0
    %v270 = vlog2.pop %v269
    %v271 = vmul.f32 %v270, 0.6931472
    %v272 = vmul.f32 -0.5, %v182
    %v273 = vadd.f32 %v272, 1.0
    %v274 = vmul.f32 %v273, %v182
    %v275 = vand.u32 2147483647, %v182
    %vm276 = vcmp.lt.f32.partialorder %v275, 0.0004427343
    %v277 = vsel %vm276, %v274, %v271
    %v278 = vadd.f32 %v184, 1.0
    %v279 = vlog2.pop %v278
    %v280 = vmul.f32 %v279, 0.6931472
    %v281 = vmul.f32 -0.5, %v184
    %v282 = vadd.f32 %v281, 1.0
    %v283 = vmul.f32 %v282, %v184
    %v284 = vand.u32 2147483647, %v184
    %vm285 = vcmp.lt.f32.partialorder %v284, 0.0004427343
    %v286 = vsel %vm285, %v283, %v280
    %v287 = vadd.f32 %v186, 1.0
    %v288 = vlog2.pop %v287
    %v289 = vmul.f32 %v288, 0.6931472
    %v290 = vmul.f32 -0.5, %v186
    %v291 = vadd.f32 %v290, 1.0
    %v292 = vmul.f32 %v291, %v186
    %v293 = vand.u32 2147483647, %v186
    %vm294 = vcmp.lt.f32.partialorder %v293, 0.0004427343
    %v295 = vsel %vm294, %v292, %v289
    %v296 = vadd.f32 %v188, 1.0
    %v297 = vlog2.pop %v296
    %v298 = vmul.f32 %v297, 0.6931472
    %v299 = vmul.f32 -0.5, %v188
    %v300 = vadd.f32 %v299, 1.0
    %v301 = vmul.f32 %v300, %v188
    %v302 = vand.u32 2147483647, %v188
    %vm303 = vcmp.lt.f32.partialorder %v302, 0.0004427343
    %v304 = vsel %vm303, %v301, %v298
    %v305 = vadd.f32 %v190, 1.0
    %v306 = vlog2.pop %v305
    %v307 = vmul.f32 %v306, 0.6931472
    %v308 = vmul.f32 -0.5, %v190
    %v309 = vadd.f32 %v308, 1.0
    %v310 = vmul.f32 %v309, %v190
    %v311 = vand.u32 2147483647, %v190
    %vm312 = vcmp.lt.f32.partialorder %v311, 0.0004427343
    %v313 = vsel %vm312, %v310, %v307
    %v314 = vadd.f32 %v192, 1.0
    %v315 = vlog2.pop %v314
    %v316 = vmul.f32 %v315, 0.6931472
    %v317 = vmul.f32 -0.5, %v192
    %v318 = vadd.f32 %v317, 1.0
    %v319 = vmul.f32 %v318, %v192
    %v320 = vand.u32 2147483647, %v192
    %vm321 = vcmp.lt.f32.partialorder %v320, 0.0004427343
    %v322 = vsel %vm321, %v319, %v316
    %v323 = vadd.f32 %v194, 1.0
    %v324 = vlog2.pop %v323
    %v325 = vmul.f32 %v324, 0.6931472
    %v326 = vmul.f32 -0.5, %v194
    %v327 = vadd.f32 %v326, 1.0
    %v328 = vmul.f32 %v327, %v194
    %v329 = vand.u32 2147483647, %v194
    %vm330 = vcmp.lt.f32.partialorder %v329, 0.0004427343
    %v331 = vsel %vm330, %v328, %v325
    %v332 = vadd.f32 %v196, 1.0
    %v333 = vlog2.pop %v332
    %v334 = vmul.f32 %v333, 0.6931472
    %v335 = vmul.f32 -0.5, %v196
    %v336 = vadd.f32 %v335, 1.0
    %v337 = vmul.f32 %v336, %v196
    %v338 = vand.u32 2147483647, %v196
    %vm339 = vcmp.lt.f32.partialorder %v338, 0.0004427343
    %v340 = vsel %vm339, %v337, %v334
    %v341 = vadd.f32 %v117, %v205
    %v342 = vadd.f32 %v118, %v214
    %v343 = vadd.f32 %v119, %v223
    %v344 = vadd.f32 %v120, %v232
    %v345 = vadd.f32 %v121, %v241
    %v346 = vadd.f32 %v122, %v250
    %v347 = vadd.f32 %v123, %v259
    %v348 = vadd.f32 %v124, %v268
    %v349 = vadd.f32 %v125, %v277
    %v350 = vadd.f32 %v126, %v286
    %v351 = vadd.f32 %v127, %v295
    %v352 = vadd.f32 %v128, %v304
    %v353 = vadd.f32 %v129, %v313
    %v354 = vadd.f32 %v130, %v322
    %v355 = vadd.f32 %v131, %v331
    %v356 = vadd.f32 %v132, %v340
    %v357 = vld [vmem:[#allocation9] sm:$0xff]
    %v358 = vld [vmem:[#allocation9 + $0x8] sm:$0xff]
    %v359 = vld [vmem:[#allocation9 + $0x10] sm:$0xff]
    %v360 = vld [vmem:[#allocation9 + $0x18] sm:$0xff]
    %v361 = vld [vmem:[#allocation9 + $0x20] sm:$0xff]
    %v362 = vld [vmem:[#allocation9 + $0x28] sm:$0xff]
    %v363 = vld [vmem:[#allocation9 + $0x30] sm:$0xff]
    %v364 = vld [vmem:[#allocation9 + $0x38] sm:$0xff]
    %v365 = vld [vmem:[#allocation9 + $0x40] sm:$0xff]
    %v366 = vld [vmem:[#allocation9 + $0x48] sm:$0xff]
    %v367 = vld [vmem:[#allocation9 + $0x50] sm:$0xff]
    %v368 = vld [vmem:[#allocation9 + $0x58] sm:$0xff]
    %v369 = vld [vmem:[#allocation9 + $0x60] sm:$0xff]
    %v370 = vld [vmem:[#allocation9 + $0x68] sm:$0xff]
    %v371 = vld [vmem:[#allocation9 + $0x70] sm:$0xff]
    %v372 = vld [vmem:[#allocation9 + $0x78] sm:$0xff]
    %v373 = vmul.f32 %v341, %v357
    %v374 = vmul.f32 %v342, %v358
    %v375 = vmul.f32 %v343, %v359
    %v376 = vmul.f32 %v344, %v360
    %v377 = vmul.f32 %v345, %v361
    %v378 = vmul.f32 %v346, %v362
    %v379 = vmul.f32 %v347, %v363
    %v380 = vmul.f32 %v348, %v364
    %v381 = vmul.f32 %v349, %v365
    %v382 = vmul.f32 %v350, %v366
    %v383 = vmul.f32 %v351, %v367
    %v384 = vmul.f32 %v352, %v368
    %v385 = vmul.f32 %v353, %v369
    %v386 = vmul.f32 %v354, %v370
    %v387 = vmul.f32 %v355, %v371
    %v388 = vmul.f32 %v356, %v372
    %v389 = vadd.f32 %v85, %v373
    %v390 = vadd.f32 %v86, %v374
    %v391 = vadd.f32 %v87, %v375
    %v392 = vadd.f32 %v88, %v376
    %v393 = vadd.f32 %v89, %v377
    %v394 = vadd.f32 %v90, %v378
    %v395 = vadd.f32 %v91, %v379
    %v396 = vadd.f32 %v92, %v380
    %v397 = vadd.f32 %v93, %v381
    %v398 = vadd.f32 %v94, %v382
    %v399 = vadd.f32 %v95, %v383
    %v400 = vadd.f32 %v96, %v384
    %v401 = vadd.f32 %v97, %v385
    %v402 = vadd.f32 %v98, %v386
    %v403 = vadd.f32 %v99, %v387
    %v404 = vadd.f32 %v100, %v388
    %v405 = vld [vmem:[#allocation2] sm:$0xff]
    %v406 = vld [vmem:[#allocation3] sm:$0xff]
    %407 = vmatprep.subr.mxu0 0.0
    %408 = vmatpush1.xpose.msra.mxu0 %v389
    %409 = vmatprep.subr.mxu0 0.0
    %410 = vmatpush1.xpose.msra.mxu0 %v390
    %411 = vmatprep.subr.mxu0 0.0
    %412 = vmatpush1.xpose.msra.mxu0 %v391
    %413 = vmatprep.subr.mxu0 0.0
    %414 = vmatpush1.xpose.msra.mxu0 %v392
    %415 = vmatprep.subr.mxu0 0.0
    %416 = vmatpush1.xpose.msra.mxu0 %v393
    %417 = vmatprep.subr.mxu0 0.0
    %418 = vmatpush1.xpose.msra.mxu0 %v394
    %419 = vmatprep.subr.mxu0 0.0
    %420 = vmatpush1.xpose.msra.mxu0 %v395
    %421 = vmatprep.subr.mxu0 0.0
    %422 = vmatpush1.xpose.msra.mxu0 %v396
    %423 = vmatprep.subr.mxu0 0.0
    %424 = vmatpush1.xpose.msra.mxu0 %v397
    %425 = vmatprep.subr.mxu0 0.0
    %426 = vmatpush1.xpose.msra.mxu0 %v398
    %427 = vmatprep.subr.mxu0 0.0
    %428 = vmatpush1.xpose.msra.mxu0 %v399
    %429 = vmatprep.subr.mxu0 0.0
    %430 = vmatpush1.xpose.msra.mxu0 %v400
    %431 = vmatprep.subr.mxu0 0.0
    %432 = vmatpush1.xpose.msra.mxu0 %v401
    %433 = vmatprep.subr.mxu0 0.0
    %434 = vmatpush1.xpose.msra.mxu0 %v402
    %435 = vmatprep.subr.mxu0 0.0
    %436 = vmatpush1.xpose.msra.mxu0 %v403
    %437 = vmatprep.subr.mxu0 0.0
    %438 = vmatpush1.xpose.msra.mxu0 %v404
    %439 = vmatprep.subr.mxu0 0.0
    %440 = vmatpush1.xpose.msra.mxu0 0.0
    %441 = vmatprep.subr.mxu0 0.0
    %442 = vmatpush1.xpose.msra.mxu0 0.0
    %443 = vmatprep.subr.mxu0 0.0
    %444 = vmatpush1.xpose.msra.mxu0 0.0
    %445 = vmatprep.subr.mxu0 0.0
    %446 = vmatpush1.xpose.msra.mxu0 0.0
    %447 = vmatprep.subr.mxu0 0.0
    %448 = vmatpush1.xpose.msra.mxu0 0.0
    %449 = vmatprep.subr.mxu0 0.0
    %450 = vmatpush1.xpose.msra.mxu0 0.0
    %451 = vmatprep.subr.mxu0 0.0
    %452 = vmatpush1.xpose.msra.mxu0 0.0
    %453 = vmatprep.subr.mxu0 0.0
    %454 = vmatpush1.xpose.msra.mxu0 0.0
    %455 = vmatprep.subr.mxu0 0.0
    %456 = vmatpush1.xpose.msra.mxu0 0.0
    %457 = vmatprep.subr.mxu0 0.0
    %458 = vmatpush1.xpose.msra.mxu0 0.0
    %459 = vmatprep.subr.mxu0 0.0
    %460 = vmatpush1.xpose.msra.mxu0 0.0
    %461 = vmatprep.subr.mxu0 0.0
    %462 = vmatpush1.xpose.msra.mxu0 0.0
    %463 = vmatprep.subr.mxu0 0.0
    %464 = vmatpush1.xpose.msra.mxu0 0.0
    %465 = vmatprep.subr.mxu0 0.0
    %466 = vmatpush1.xpose.msra.mxu0 0.0
    %467 = vmatprep.subr.mxu0 0.0
    %468 = vmatpush1.xpose.msra.mxu0 0.0
    %469 = vmatprep.subr.mxu0 0.0
    %470 = vmatpush1.xpose.msra.mxu0 0.0
    %471 = vmatprep.mubr.f32.mxu0 0.0
    %472 = vmatmul.mubr.f32.gmra.mrb[0].mxu0 %v406
    %v473 = vpop.f32.mrb[0].mxu0
    %v474 = vadd.f32 0.0, %v473
    %v475 = vpop.f32.mrb[0].mxu0
    %476 = vdwg.mxu0
    %v477 = vadd.f32 %v405, %v474
    %478 = vst [vmem:[#allocation2] sm:$0xff] %v477
    // Predicated region
    $region50: #{tpu_custom_call.1} parent=1 // pred_check
      %p479 = pneg %p80
    $region51: #{tpu_custom_call.1} parent=1 // pred_check_branch
      %481 = sbr.rel (%p479) target = $region53
    $region52: #{tpu_custom_call.1} parent=1 // pred_region
      %v482 = vld [vmem:[%s4] sm:$0x1]
      %v483 = vld [vmem:[%s5] sm:$0x1]
      %v484 = vmax.f32 %v483, 0.0
      %v485 = vand.u32 2147483647, %v483
      %v486 = vsub.f32 0.0, %v485
      %v487 = vmul.f32 %v486, 1.442695
      %v488 = vpow.pop %v487
      %v489 = vadd.f32 %v488, 1.0
      %v490 = vlog2.pop %v489
      %v491 = vmul.f32 %v490, 0.6931472
      %v492 = vmul.f32 -0.5, %v488
      %v493 = vadd.f32 %v492, 1.0
      %v494 = vmul.f32 %v493, %v488
      %v495 = vand.u32 2147483647, %v488
      %vm496 = vcmp.lt.f32.partialorder %v495, 0.0004427343
      %v497 = vsel %vm496, %v494, %v491
      %v498 = vadd.f32 %v484, %v497
      %v499 = vld [vmem:[%s6] sm:$0x1]
      %v500 = vmul.f32 %v498, %v499
      %v501 = vadd.f32 %v482, %v500
      %v502 = vld [vmem:[#allocation2] sm:$0xff]
      %v504 = vlaneseq
      %v505 = vshrl.u32 %v504, 7
      %v506 = vsub.s32 0, %v505
      %v507 = vrot.slane %v501, %v506
      %v509 = vadd.f32 %v502, %v507
      %510 = vst [vmem:[#allocation11] sm:$0xff] %v509
    $region53: #{tpu_custom_call.1} parent=1 // pred_fallthru
      _
    // Predicated region
    $region54: #{tpu_custom_call.1} parent=1 // pred_check
      _
    $region55: #{tpu_custom_call.1} parent=1 // pred_check_branch
      %512 = sbr.rel (0) target = $region57
    $region56: #{tpu_custom_call.1} parent=1 // pred_region
      %s514 = ssub.s32 128, 128
      %515 = vsyncadd [#allocation5], %s514
      %s517 = sshll.u32 [#allocation11], 4
      %s518 = int_to_ptr.vmem [resolvable:$true] %s517
      %520 = dma.vmem_to_hbm [thread:$0]  %s518, 128, %s7, [#allocation5]
    $region57: #{tpu_custom_call.1} parent=1 // pred_fallthru
      _
    // Predicated region
    $region58: #{tpu_custom_call.1} parent=1 // pred_check
      _
    $region59: #{tpu_custom_call.1} parent=1 // pred_check_branch
      %522 = sbr.rel (0) target = $region61
    $region60: #{tpu_custom_call.1} parent=1 // pred_region
      %523 = dma.done [#allocation5], 128
    $region61: #{tpu_custom_call.1} parent=1 // pred_fallthru
      _
    %524 = vsyncpa [#allocation4], 1
    %525 = vsyncpa [#allocation7], 1
    %526 = vsyncpa [#allocation10], 1
    %527 = vsyncpa [#allocation5], 1

</llo_original>
